<compile_context>
chip_gen: v7x
topology: tpu7x:2x2x1
jax: 0.10.0
libtpu: 0.0.40
codegen_flags: <defaults>
</compile_context>

<pallas_src>
import functools

import jax
import jax.numpy as jnp
from jax.experimental import pallas as pl
from jax.experimental.pallas import tpu as pltpu


def _round_up(x, m):
    return ((x + m - 1) // m) * m


def _disc_kernel(h_pl_ref, h_c_ref, h_mi_ref, wt_ref, b_ref, out_ref, *, n_h1, num_neg):
    """One row tile of bilinear scores + sigmoid.

    h_pl_ref: (T, n_h1)            positive node features
    h_c_ref:  (T, n_h2)            context features
    h_mi_ref: (T, K * n_h1)        gathered negatives, lane-packed per sample
    wt_ref:   (n_h2, n_h1)         bilinear weight, pre-transposed (VMEM-resident)
    b_ref:    (1,) in SMEM         bilinear bias
    out_ref:  (T, 1 + K) f32       col 0 = positive score, cols 1.. = negative scores
    """
    b = b_ref[0]

    # Single MXU matmul per tile (bf16 inputs use the bf16 MXU path, f32 accumulate).
    q = jnp.dot(h_c_ref[...], wt_ref[...], preferred_element_type=jnp.float32)  # (T, n_h1)

    # Positive branch: VPU multiply + XLU lane reduce.
    s1 = jnp.sum(h_pl_ref[...].astype(jnp.float32) * q, axis=-1, keepdims=True)  # (T, 1)
    out_ref[:, 0:1] = jax.nn.sigmoid(s1 + b)

    # Negative branch: one n_h1-wide lane chunk per negative sample (static unroll).
    for k in range(num_neg):
        hk = h_mi_ref[:, k * n_h1:(k + 1) * n_h1].astype(jnp.float32)            # (T, n_h1)
        sk = jnp.sum(hk * q, axis=-1, keepdims=True)                             # (T, 1)
        out_ref[:, k + 1:k + 2] = jax.nn.sigmoid(sk + b)


def discriminator_tg_forward(h_c, h_pl, sample_tensor, weight, bias,
                             s_bias1=None, s_bias2=None, max_tile_n=1024):
    """Pallas equivalent of Discriminator_tg.forward.

    h_c:            (num_nodes, n_h2)
    h_pl:           (num_nodes, n_h1)
    sample_tensor:  (num_nodes, num_neg) int indices into rows of h_pl
    weight:         (n_h1, n_h2)   == torch nn.Bilinear weight[0]
    bias:           scalar         == torch nn.Bilinear bias[0]
    returns (sc_1: (num_nodes,), sc_2: (num_nodes, num_neg))
    """
    num_nodes, n_h1 = h_pl.shape
    n_h2 = h_c.shape[1]
    num_neg = sample_tensor.shape[1]

    # Stream in native float dtype (bf16 stays bf16); accumulate in f32 in-kernel.
    def _as_stream(x):
        return x if x.dtype in (jnp.bfloat16, jnp.float32) else x.astype(jnp.float32)

    h_pl = _as_stream(h_pl)
    h_c = _as_stream(h_c)

    # Negative-sample gather (XLA glue), flattened to a lane-dense 2-D slab.
    h_mi = jnp.take(h_pl, sample_tensor, axis=0).reshape(num_nodes, num_neg * n_h1)

    # Pre-transpose the bilinear weight so the kernel matmul is h_c @ W^T.
    w_t = jnp.asarray(weight).astype(jnp.float32).T                      # (n_h2, n_h1)
    if h_c.dtype == jnp.bfloat16:
        w_t = w_t.astype(jnp.bfloat16)                                   # bf16 MXU path
    b_arr = jnp.asarray(bias, jnp.float32).reshape(1)

    # ---- VMEM-budgeted row tile -------------------------------------------------
    try:
        vmem_cap = int(getattr(pltpu.get_tpu_info(), "vmem_capacity_bytes", 64 << 20))
    except Exception:  # pragma: no cover - conservative fallback (v7x physical VMEM)
        vmem_cap = 64 << 20

    in_item = jnp.dtype(h_pl.dtype).itemsize
    per_row = (n_h1 + n_h2 + num_neg * n_h1) * in_item + (1 + num_neg) * 4
    w_bytes = int(w_t.size) * jnp.dtype(w_t.dtype).itemsize

    def _tile_bytes(t):
        # double-buffered streamed inputs/outputs + (conservatively double) weight + slack
        return 2 * t * per_row + 2 * w_bytes + (2 << 20)

    budget = int(0.6 * vmem_cap)
    tile = max(8, min(int(max_tile_n), _round_up(num_nodes, 8)))
    tile = _round_up(tile, 8)
    while tile > 8 and _tile_bytes(tile) > budget:
        tile -= 8
    # Keep >= 2 grid steps when possible so the "parallel" row axis can shard across
    # v7x's two TensorCores (neutral on v5e/v6e which have a single TC).
    if num_nodes > 8:
        tile = min(tile, _round_up(-(-num_nodes // 2), 8))
    tile = max(8, tile)

    n_pad = _round_up(num_nodes, tile)
    if n_pad != num_nodes:
        pad = n_pad - num_nodes
        h_pl = jnp.pad(h_pl, ((0, pad), (0, 0)))
        h_c = jnp.pad(h_c, ((0, pad), (0, 0)))
        h_mi = jnp.pad(h_mi, ((0, pad), (0, 0)))

    vmem_limit = int(min(vmem_cap, max(32 << 20, _tile_bytes(tile) + (8 << 20))))

    kernel = functools.partial(_disc_kernel, n_h1=n_h1, num_neg=num_neg)
    out = pl.pallas_call(
        kernel,
        out_shape=jax.ShapeDtypeStruct((n_pad, 1 + num_neg), jnp.float32),
        grid=(n_pad // tile,),
        in_specs=[
            pl.BlockSpec((tile, n_h1), lambda i: (i, 0)),                 # h_pl tile
            pl.BlockSpec((tile, n_h2), lambda i: (i, 0)),                 # h_c tile
            pl.BlockSpec((tile, num_neg * n_h1), lambda i: (i, 0)),       # gathered negatives
            pl.BlockSpec((n_h2, n_h1), lambda i: (0, 0)),                 # weight, resident
            pl.BlockSpec(memory_space=pltpu.MemorySpace.SMEM),            # bias scalar
        ],
        out_specs=pl.BlockSpec((tile, 1 + num_neg), lambda i: (i, 0)),
        compiler_params=pltpu.CompilerParams(
            dimension_semantics=("parallel",),
            vmem_limit_bytes=vmem_limit),
    )(h_pl, h_c, h_mi, w_t, b_arr)

    sc_1 = out[:num_nodes, 0]
    sc_2 = out[:num_nodes, 1:]
    # PyTorch adds s_bias AFTER the sigmoid; reproduce that exactly.
    if s_bias1 is not None:
        sc_1 = sc_1 + s_bias1
    if s_bias2 is not None:
        sc_2 = sc_2 + s_bias2
    return sc_1, sc_2


def _reference_forward(h_c, h_pl, sample_tensor, weight, bias):
    """Pure-JAX reference matching the PyTorch forward."""
    x = jnp.einsum("ni,ij,nj->n", h_pl, weight, h_c) + bias
    sc_1 = jax.nn.sigmoid(x)
    h_mi = h_pl[sample_tensor]                                           # (N, K, n_h1)
    x2 = jnp.einsum("nki,ij,nj->nk", h_mi, weight, h_c) + bias
    sc_2 = jax.nn.sigmoid(x2)
    return sc_1, sc_2


def _run_case(key, num_nodes, n_h1, n_h2, num_neg):
    k_w, k_hc, k_hpl, k_samp = jax.random.split(key, 4)
    # nn.Bilinear(n_h1, n_h2, 1): weight (1, n_h1, n_h2) xavier_uniform_, bias 0.
    fan_in, fan_out = n_h1 * n_h2, 1 * n_h2
    bound = (6.0 / (fan_in + fan_out)) ** 0.5
    weight = jax.random.uniform(k_w, (n_h1, n_h2), jnp.float32, -bound, bound)
    bias = jnp.float32(0.0)

    h_c = jax.random.normal(k_hc, (num_nodes, n_h2), jnp.float32)
    h_pl = jax.random.normal(k_hpl, (num_nodes, n_h1), jnp.float32)
    sample_tensor = jax.random.randint(k_samp, (num_nodes, num_neg), 0, num_nodes,
                                       dtype=jnp.int32)

    sc_1, sc_2 = discriminator_tg_forward(h_c, h_pl, sample_tensor, weight, bias)
    jax.block_until_ready((sc_1, sc_2))

    ref_1, ref_2 = _reference_forward(h_c, h_pl, sample_tensor, weight, bias)
    assert sc_1.shape == (num_nodes,) and sc_2.shape == (num_nodes, num_neg)
    assert jnp.allclose(sc_1, ref_1, atol=1e-5, rtol=1e-5)
    assert jnp.allclose(sc_2, ref_2, atol=1e-5, rtol=1e-5)


if __name__ == "__main__":
    key = jax.random.PRNGKey(0)
    k1, k2 = jax.random.split(key)
    # Small canonical case.
    _run_case(k1, num_nodes=8, n_h1=32, n_h2=32, num_neg=4)
    # Non-square hidden dims + row padding + multi-step ("parallel") grid.
    _run_case(k2, num_nodes=200, n_h1=64, n_h2=48, num_neg=3)
    print("KERNEL_OK")
</pallas_src>

<mosaic_0001>
module attributes {stable_mosaic.version = 11 : i64} {
  func.func @_disc_kernel(%arg0: i32, %arg1: memref<8x32xf32, #tpu.memory_space<vmem>>, %arg2: memref<8x32xf32, #tpu.memory_space<vmem>>, %arg3: memref<8x128xf32, #tpu.memory_space<vmem>>, %arg4: memref<32x32xf32, #tpu.memory_space<vmem>>, %arg5: memref<1xf32, #tpu.memory_space<smem>>, %arg6: memref<8x5xf32, #tpu.memory_space<vmem>>) attributes {dimension_semantics = [#tpu.dimension_semantics<parallel>], iteration_bounds = array<i64: 1>, scalar_prefetch = 0 : i64, scratch_operands = 0 : i64, tpu.core_type = #tpu.core_type<tc>, window_params = [{transform_indices = @transform_0, window_bounds = array<i64: 8, 32>}, {transform_indices = @transform_1, window_bounds = array<i64: 8, 32>}, {transform_indices = @transform_2, window_bounds = array<i64: 8, 128>}, {pipeline_mode = #tpu.pipeline_mode<synchronous>, transform_indices = @transform_3, window_bounds = array<i64: 32, 32>}, {transform_indices = @transform_4, window_bounds = array<i64: 1>}, {transform_indices = @transform_5, window_bounds = array<i64: 8, 5>}]} {
    %c0 = arith.constant 0 : index
    %0 = memref.load %arg5[%c0] : memref<1xf32, #tpu.memory_space<smem>>
    %c0_0 = arith.constant 0 : index
    %c0_1 = arith.constant 0 : index
    %1 = vector.load %arg2[%c0_0, %c0_1] : memref<8x32xf32, #tpu.memory_space<vmem>>, vector<8x32xf32>
    %c0_2 = arith.constant 0 : index
    %c0_3 = arith.constant 0 : index
    %2 = vector.load %arg4[%c0_2, %c0_3] : memref<32x32xf32, #tpu.memory_space<vmem>>, vector<32x32xf32>
    %cst = arith.constant dense<0.000000e+00> : vector<8x32xf32>
    %3 = tpu.matmul %1, %2, %cst {dimension_numbers = #tpu.dot_dimension_numbers<[1], [0], [0], [1], [0, 0, 1, 1], [], []>} : vector<8x32xf32>, vector<32x32xf32>, vector<8x32xf32> -> vector<8x32xf32>
    %c0_4 = arith.constant 0 : index
    %c0_5 = arith.constant 0 : index
    %4 = vector.load %arg1[%c0_4, %c0_5] : memref<8x32xf32, #tpu.memory_space<vmem>>, vector<8x32xf32>
    %5 = arith.mulf %4, %3 : vector<8x32xf32>
    %cst_6 = arith.constant dense<0.000000e+00> : vector<8xf32>
    %6 = vector.multi_reduction <add>, %5, %cst_6 [1] : vector<8x32xf32> to vector<8xf32>
    %7 = vector.shape_cast %6 : vector<8xf32> to vector<8x1xf32>
    %8 = vector.broadcast %0 : f32 to vector<8x1xf32>
    %9 = arith.addf %7, %8 : vector<8x1xf32>
    %10 = arith.negf %9 : vector<8x1xf32>
    %11 = math.exp %10 : vector<8x1xf32>
    %cst_7 = arith.constant 1.000000e+00 : f32
    %12 = vector.broadcast %cst_7 : f32 to vector<8x1xf32>
    %13 = arith.addf %12, %11 : vector<8x1xf32>
    %14 = arith.divf %12, %13 : vector<8x1xf32>
    %c0_8 = arith.constant 0 : index
    %c0_9 = arith.constant 0 : index
    %15 = vector.load %arg6[%c0_8, %c0_9] : memref<8x5xf32, #tpu.memory_space<vmem>>, vector<8x1xf32>
    tpu.vector_store %arg6[%c0_8, %c0_9], %14 {strides = array<i32>} : memref<8x5xf32, #tpu.memory_space<vmem>>, vector<8x1xf32>,
    %c0_10 = arith.constant 0 : index
    %c0_11 = arith.constant 0 : index
    %16 = vector.load %arg3[%c0_10, %c0_11] : memref<8x128xf32, #tpu.memory_space<vmem>>, vector<8x32xf32>
    %17 = arith.mulf %16, %3 : vector<8x32xf32>
    %cst_12 = arith.constant dense<0.000000e+00> : vector<8xf32>
    %18 = vector.multi_reduction <add>, %17, %cst_12 [1] : vector<8x32xf32> to vector<8xf32>
    %19 = vector.shape_cast %18 : vector<8xf32> to vector<8x1xf32>
    %20 = vector.broadcast %0 : f32 to vector<8x1xf32>
    %21 = arith.addf %19, %20 : vector<8x1xf32>
    %22 = arith.negf %21 : vector<8x1xf32>
    %23 = math.exp %22 : vector<8x1xf32>
    %cst_13 = arith.constant 1.000000e+00 : f32
    %24 = vector.broadcast %cst_13 : f32 to vector<8x1xf32>
    %25 = arith.addf %24, %23 : vector<8x1xf32>
    %26 = arith.divf %24, %25 : vector<8x1xf32>
    %c0_14 = arith.constant 0 : index
    %c1 = arith.constant 1 : index
    %27 = vector.load %arg6[%c0_14, %c1] : memref<8x5xf32, #tpu.memory_space<vmem>>, vector<8x1xf32>
    tpu.vector_store %arg6[%c0_14, %c1], %26 {strides = array<i32>} : memref<8x5xf32, #tpu.memory_space<vmem>>, vector<8x1xf32>,
    %c0_15 = arith.constant 0 : index
    %c32 = arith.constant 32 : index
    %28 = vector.load %arg3[%c0_15, %c32] : memref<8x128xf32, #tpu.memory_space<vmem>>, vector<8x32xf32>
    %29 = arith.mulf %28, %3 : vector<8x32xf32>
    %cst_16 = arith.constant dense<0.000000e+00> : vector<8xf32>
    %30 = vector.multi_reduction <add>, %29, %cst_16 [1] : vector<8x32xf32> to vector<8xf32>
    %31 = vector.shape_cast %30 : vector<8xf32> to vector<8x1xf32>
    %32 = vector.broadcast %0 : f32 to vector<8x1xf32>
    %33 = arith.addf %31, %32 : vector<8x1xf32>
    %34 = arith.negf %33 : vector<8x1xf32>
    %35 = math.exp %34 : vector<8x1xf32>
    %cst_17 = arith.constant 1.000000e+00 : f32
    %36 = vector.broadcast %cst_17 : f32 to vector<8x1xf32>
    %37 = arith.addf %36, %35 : vector<8x1xf32>
    %38 = arith.divf %36, %37 : vector<8x1xf32>
    %c0_18 = arith.constant 0 : index
    %c2 = arith.constant 2 : index
    %39 = vector.load %arg6[%c0_18, %c2] : memref<8x5xf32, #tpu.memory_space<vmem>>, vector<8x1xf32>
    tpu.vector_store %arg6[%c0_18, %c2], %38 {strides = array<i32>} : memref<8x5xf32, #tpu.memory_space<vmem>>, vector<8x1xf32>,
    %c0_19 = arith.constant 0 : index
    %c64 = arith.constant 64 : index
    %40 = vector.load %arg3[%c0_19, %c64] : memref<8x128xf32, #tpu.memory_space<vmem>>, vector<8x32xf32>
    %41 = arith.mulf %40, %3 : vector<8x32xf32>
    %cst_20 = arith.constant dense<0.000000e+00> : vector<8xf32>
    %42 = vector.multi_reduction <add>, %41, %cst_20 [1] : vector<8x32xf32> to vector<8xf32>
    %43 = vector.shape_cast %42 : vector<8xf32> to vector<8x1xf32>
    %44 = vector.broadcast %0 : f32 to vector<8x1xf32>
    %45 = arith.addf %43, %44 : vector<8x1xf32>
    %46 = arith.negf %45 : vector<8x1xf32>
    %47 = math.exp %46 : vector<8x1xf32>
    %cst_21 = arith.constant 1.000000e+00 : f32
    %48 = vector.broadcast %cst_21 : f32 to vector<8x1xf32>
    %49 = arith.addf %48, %47 : vector<8x1xf32>
    %50 = arith.divf %48, %49 : vector<8x1xf32>
    %c0_22 = arith.constant 0 : index
    %c3 = arith.constant 3 : index
    %51 = vector.load %arg6[%c0_22, %c3] : memref<8x5xf32, #tpu.memory_space<vmem>>, vector<8x1xf32>
    tpu.vector_store %arg6[%c0_22, %c3], %50 {strides = array<i32>} : memref<8x5xf32, #tpu.memory_space<vmem>>, vector<8x1xf32>,
    %c0_23 = arith.constant 0 : index
    %c96 = arith.constant 96 : index
    %52 = vector.load %arg3[%c0_23, %c96] : memref<8x128xf32, #tpu.memory_space<vmem>>, vector<8x32xf32>
    %53 = arith.mulf %52, %3 : vector<8x32xf32>
    %cst_24 = arith.constant dense<0.000000e+00> : vector<8xf32>
    %54 = vector.multi_reduction <add>, %53, %cst_24 [1] : vector<8x32xf32> to vector<8xf32>
    %55 = vector.shape_cast %54 : vector<8xf32> to vector<8x1xf32>
    %56 = vector.broadcast %0 : f32 to vector<8x1xf32>
    %57 = arith.addf %55, %56 : vector<8x1xf32>
    %58 = arith.negf %57 : vector<8x1xf32>
    %59 = math.exp %58 : vector<8x1xf32>
    %cst_25 = arith.constant 1.000000e+00 : f32
    %60 = vector.broadcast %cst_25 : f32 to vector<8x1xf32>
    %61 = arith.addf %60, %59 : vector<8x1xf32>
    %62 = arith.divf %60, %61 : vector<8x1xf32>
    %c0_26 = arith.constant 0 : index
    %c4 = arith.constant 4 : index
    %63 = vector.load %arg6[%c0_26, %c4] : memref<8x5xf32, #tpu.memory_space<vmem>>, vector<8x1xf32>
    tpu.vector_store %arg6[%c0_26, %c4], %62 {strides = array<i32>} : memref<8x5xf32, #tpu.memory_space<vmem>>, vector<8x1xf32>,
    return
  }
  func.func @transform_0(%arg0: i32) -> (i32, i32) {
    %c0_i32 = arith.constant 0 : i32
    %c0_i32_0 = arith.constant 0 : i32
    return %arg0, %c0_i32 : i32, i32
  }
  func.func @transform_1(%arg0: i32) -> (i32, i32) {
    %c0_i32 = arith.constant 0 : i32
    %c0_i32_0 = arith.constant 0 : i32
    return %arg0, %c0_i32 : i32, i32
  }
  func.func @transform_2(%arg0: i32) -> (i32, i32) {
    %c0_i32 = arith.constant 0 : i32
    %c0_i32_0 = arith.constant 0 : i32
    return %arg0, %c0_i32 : i32, i32
  }
  func.func @transform_3(%arg0: i32) -> (i32, i32) {
    %c0_i32 = arith.constant 0 : i32
    %c0_i32_0 = arith.constant 0 : i32
    %c0_i32_1 = arith.constant 0 : i32
    return %c0_i32, %c0_i32_0 : i32, i32
  }
  func.func @transform_4(%arg0: i32) -> i32 {
    %c0_i32 = arith.constant 0 : i32
    %c0_i32_0 = arith.constant 0 : i32
    return %c0_i32 : i32
  }
  func.func @transform_5(%arg0: i32) -> (i32, i32) {
    %c0_i32 = arith.constant 0 : i32
    %c0_i32_0 = arith.constant 0 : i32
    return %arg0, %c0_i32 : i32, i32
  }
}

</mosaic_0001>

<llo_original>
// kernel: tpu_custom_call.1
$region0: #{tpu_custom_call.1}
  #allocation0 [shape = 'u32[]', space=smem, size = 0x4, offset = 0x4, fixed_abs, tag = 'smem constant byte address 0x4 - core index']
  #allocation1 [shape = 'u32[144,128]{1,0:T(1,128)}', space=vmem, size = 0x12000, scoped, tag = 'internal scratch']
  #allocation2 [shape = 'f32[1]{0:T(128)S(6)}', space=smem, size = 0x200, scoped, tag = 'scoped memory for tpu_custom_call.1']
  %s0 = inlined_call_operand.hbm [shape: f32[8,32], index: 0, kind: input, shape index: {}]
  %s1 = inlined_call_operand.hbm [shape: f32[8,32], index: 1, kind: input, shape index: {}]
  %s2 = inlined_call_operand.vmem [shape: f32[8,128], index: 2, kind: input, shape index: {}]
  %s3 = inlined_call_operand.hbm [shape: f32[32,32], index: 3, kind: input, shape index: {}]
  %s4 = inlined_call_operand.<no memory space> [shape: f32[1], index: 4, kind: input, shape index: {}]
  %s5 = inlined_call_operand.hbm [shape: f32[8,5], index: 5, kind: output, shape index: {}]
  %s6 = sld [smem:[#allocation0]]
  $region42: #{tpu_custom_call.1} parent=0
    _
  %s8 = ssub.s32 1, %s6
  %s9 = scalar_select 0, %s8, %s6
  %10 = sst [smem:[#allocation2]] %s4
  $region1: #{tpu_custom_call.1} parent=0
    #allocation3 [shape = 'u8[4096]{0}', space=vmem, size = 0x1000, scoped, tag = 'input window, operand 0, single buffered']
    #allocation4 [shape = 's32[1]{0}', space=sflag, size = 0x4, scoped, tag = 'scoped memory for tpu_custom_call.1']
    #allocation5 [shape = 's32[1]{0}', space=sflag, size = 0x4, scoped, tag = 'scoped memory for tpu_custom_call.1']
    #allocation6 [shape = 'u8[4096]{0}', space=vmem, size = 0x1000, scoped, tag = 'input window, operand 1, single buffered']
    #allocation7 [shape = 's32[1]{0}', space=sflag, size = 0x4, scoped, tag = 'scoped memory for tpu_custom_call.1']
    #allocation8 [shape = 'u8[16384]{0}', space=vmem, size = 0x4000, scoped, tag = 'input window, operand 3, single buffered']
    #allocation9 [shape = 'u8[4096]{0}', space=vmem, size = 0x1000, scoped, tag = 'output window, operand 0, single buffered']
    %11 = vsyncpa [#allocation4], 0
    %12 = vsyncpa [#allocation7], 0
    %13 = vsyncpa [#allocation5], 0
    // Predicated region
    $region2: #{tpu_custom_call.1} parent=1 // pred_check
      _
    $region3: #{tpu_custom_call.1} parent=1 // pred_check_branch
      %15 = sbr.rel (0) target = $region5
    $region4: #{tpu_custom_call.1} parent=1 // pred_region
      %s17 = ssub.s32 128, 128
      %18 = vsyncadd [#allocation4], %s17
      %s20 = sshll.u32 [#allocation3], 4
      %s21 = int_to_ptr.vmem [resolvable:$true] %s20
      %23 = dma.hbm_to_vmem [thread:$0]  %s0, 128, %s21, [#allocation4]
    $region5: #{tpu_custom_call.1} parent=1 // pred_fallthru
      _
    // Predicated region
    $region6: #{tpu_custom_call.1} parent=1 // pred_check
      _
    $region7: #{tpu_custom_call.1} parent=1 // pred_check_branch
      %25 = sbr.rel (0) target = $region9
    $region8: #{tpu_custom_call.1} parent=1 // pred_region
      %s27 = ssub.s32 128, 128
      %28 = vsyncadd [#allocation7], %s27
      %s30 = sshll.u32 [#allocation6], 4
      %s31 = int_to_ptr.vmem [resolvable:$true] %s30
      %33 = dma.hbm_to_vmem [thread:$0]  %s1, 128, %s31, [#allocation7]
    $region9: #{tpu_custom_call.1} parent=1 // pred_fallthru
      _
    // Predicated region
    $region10: #{tpu_custom_call.1} parent=1 // pred_check
      _
    $region11: #{tpu_custom_call.1} parent=1 // pred_check_branch
      %35 = sbr.rel (0) target = $region13
    $region12: #{tpu_custom_call.1} parent=1 // pred_region
      _
    $region13: #{tpu_custom_call.1} parent=1 // pred_fallthru
      _
    // Predicated region
    $region14: #{tpu_custom_call.1} parent=1 // pred_check
      _
    $region15: #{tpu_custom_call.1} parent=1 // pred_check_branch
      %37 = sbr.rel (0) target = $region17
    $region16: #{tpu_custom_call.1} parent=1 // pred_region
      %s39 = ssub.s32 512, 512
      %40 = vsyncadd [#allocation7], %s39
      %s41 = sshll.u32 [#allocation8], 4
      %s42 = int_to_ptr.vmem [resolvable:$true] %s41
      %47 = dma.hbm_to_vmem [thread:$0]  %s3, 512, %s42, [#allocation7], 128, 128, 8
    $region17: #{tpu_custom_call.1} parent=1 // pred_fallthru
      _
    // Predicated region
    $region18: #{tpu_custom_call.1} parent=1 // pred_check
      _
    $region19: #{tpu_custom_call.1} parent=1 // pred_check_branch
      %49 = sbr.rel (0) target = $region21
    $region20: #{tpu_custom_call.1} parent=1 // pred_region
      _
    $region21: #{tpu_custom_call.1} parent=1 // pred_fallthru
      _
    // Predicated region
    $region22: #{tpu_custom_call.1} parent=1 // pred_check
      _
    $region23: #{tpu_custom_call.1} parent=1 // pred_check_branch
      %51 = sbr.rel (0) target = $region25
    $region24: #{tpu_custom_call.1} parent=1 // pred_region
      %52 = dma.done [#allocation4], 128
    $region25: #{tpu_custom_call.1} parent=1 // pred_fallthru
      _
    // Predicated region
    $region26: #{tpu_custom_call.1} parent=1 // pred_check
      _
    $region27: #{tpu_custom_call.1} parent=1 // pred_check_branch
      %54 = sbr.rel (0) target = $region29
    $region28: #{tpu_custom_call.1} parent=1 // pred_region
      %55 = dma.done [#allocation7], 128
    $region29: #{tpu_custom_call.1} parent=1 // pred_fallthru
      _
    // Predicated region
    $region30: #{tpu_custom_call.1} parent=1 // pred_check
      _
    $region31: #{tpu_custom_call.1} parent=1 // pred_check_branch
      %57 = sbr.rel (0) target = $region33
    $region32: #{tpu_custom_call.1} parent=1 // pred_region
      %58 = dma.done [#allocation7], 512
    $region33: #{tpu_custom_call.1} parent=1 // pred_fallthru
      _
    %s59 = sld [smem:[#allocation2]]
    %v60 = vld [vmem:[#allocation6] sm:$0xff]
    %v61 = vld [vmem:[#allocation8] sm:$0xff]
    %v62 = vld [vmem:[#allocation8 + $0x8] sm:$0xff]
    %v63 = vld [vmem:[#allocation8 + $0x10] sm:$0xff]
    %v64 = vld [vmem:[#allocation8 + $0x18] sm:$0xff]
    %vm65 = vcmask 261120
    %v67 = vsel %vm65, %v60, 0
    %69 = vmatprep.subr.mxu0 0.0
    %70 = vmatpush1.msra.mxu0 %v61
    %71 = vmatprep.subr.mxu0 0.0
    %72 = vmatpush1.msra.mxu0 %v62
    %73 = vmatprep.subr.mxu0 0.0
    %74 = vmatpush1.msra.mxu0 %v63
    %75 = vmatprep.subr.mxu0 0.0
    %76 = vmatpush1.msra.mxu0 %v64
    %77 = vmatprep.subr.mxu0 0.0
    %78 = vmatpush1.msra.mxu0 0.0
    %79 = vmatprep.subr.mxu0 0.0
    %80 = vmatpush1.msra.mxu0 0.0
    %81 = vmatprep.subr.mxu0 0.0
    %82 = vmatpush1.msra.mxu0 0.0
    %83 = vmatprep.subr.mxu0 0.0
    %84 = vmatpush1.msra.mxu0 0.0
    %85 = vmatprep.subr.mxu0 0.0
    %86 = vmatpush1.msra.mxu0 0.0
    %87 = vmatprep.subr.mxu0 0.0
    %88 = vmatpush1.msra.mxu0 0.0
    %89 = vmatprep.subr.mxu0 0.0
    %90 = vmatpush1.msra.mxu0 0.0
    %91 = vmatprep.subr.mxu0 0.0
    %92 = vmatpush1.msra.mxu0 0.0
    %93 = vmatprep.subr.mxu0 0.0
    %94 = vmatpush1.msra.mxu0 0.0
    %95 = vmatprep.subr.mxu0 0.0
    %96 = vmatpush1.msra.mxu0 0.0
    %97 = vmatprep.subr.mxu0 0.0
    %98 = vmatpush1.msra.mxu0 0.0
    %99 = vmatprep.subr.mxu0 0.0
    %100 = vmatpush1.msra.mxu0 0.0
    %101 = vmatprep.subr.mxu0 0.0
    %102 = vmatpush1.msra.mxu0 0.0
    %103 = vmatprep.subr.mxu0 0.0
    %104 = vmatpush1.msra.mxu0 0.0
    %105 = vmatprep.subr.mxu0 0.0
    %106 = vmatpush1.msra.mxu0 0.0
    %107 = vmatprep.subr.mxu0 0.0
    %108 = vmatpush1.msra.mxu0 0.0
    %109 = vmatprep.subr.mxu0 0.0
    %110 = vmatpush1.msra.mxu0 0.0
    %111 = vmatprep.subr.mxu0 0.0
    %112 = vmatpush1.msra.mxu0 0.0
    %113 = vmatprep.subr.mxu0 0.0
    %114 = vmatpush1.msra.mxu0 0.0
    %115 = vmatprep.subr.mxu0 0.0
    %116 = vmatpush1.msra.mxu0 0.0
    %117 = vmatprep.subr.mxu0 0.0
    %118 = vmatpush1.msra.mxu0 0.0
    %119 = vmatprep.subr.mxu0 0.0
    %120 = vmatpush1.msra.mxu0 0.0
    %121 = vmatprep.subr.mxu0 0.0
    %122 = vmatpush1.msra.mxu0 0.0
    %123 = vmatprep.subr.mxu0 0.0
    %124 = vmatpush1.msra.mxu0 0.0
    %125 = vmatprep.subr.mxu0 0.0
    %126 = vmatpush1.msra.mxu0 0.0
    %127 = vmatprep.subr.mxu0 0.0
    %128 = vmatpush1.msra.mxu0 0.0
    %129 = vmatprep.subr.mxu0 0.0
    %130 = vmatpush1.msra.mxu0 0.0
    %131 = vmatprep.subr.mxu0 0.0
    %132 = vmatpush1.msra.mxu0 0.0
    %133 = vmatprep.mubr.f32.mxu0 0.0
    %134 = vmatmul.mubr.f32.gmra.mrb[0].mxu0 %v67
    %v135 = vpop.f32.mrb[0].mxu0
    %v136 = vadd.f32 0.0, %v135
    %v137 = vpop.f32.mrb[0].mxu0
    %138 = vdwg.mxu0
    %v139 = vld [vmem:[#allocation3] sm:$0xff]
    %v140 = vmul.f32 %v139, %v136
    %v141 = vsel %vm65, %v140, 0.0
    %142 = vadd.xlane.f32.xlu0 %v141
    %v143 = vpop.xlane.xlu0 %142
    %v144 = vstv %s59
    %v145 = vadd.f32 %v143, %v144
    %v146 = vxor.u32 %v145, 2147483648
    %v147 = vmul.f32 %v146, 1.442695
    %v148 = vpow.pop %v147
    %v149 = vadd.f32 %v148, 1.0
    %v150 = vrcp.pop %v149
    %v151 = vmul.f32 1.0, %v150
    %vm152 = vcmask 7168
    %153 = vst.msk [vmem:[#allocation9] sm:$0xff] %vm152, %v151
    %v154 = vld [vmem:[%s2] sm:$0xff]
    %v155 = vmul.f32 %v154, %v136
    %v156 = vsel %vm65, %v155, 0.0
    %157 = vadd.xlane.f32.xlu0 %v156
    %v158 = vpop.xlane.xlu0 %157
    %v159 = vadd.f32 %v158, %v144
    %v160 = vxor.u32 %v159, 2147483648
    %v161 = vmul.f32 %v160, 1.442695
    %v162 = vpow.pop %v161
    %v163 = vadd.f32 %v162, 1.0
    %v164 = vrcp.pop %v163
    %v165 = vmul.f32 1.0, %v164
    %vm166 = vcmask 15368
    %167 = vst.msk [vmem:[#allocation9] sm:$0xff] %vm166, %v165
    %v168 = vld [vmem:[%s2] sm:$0xff]
    %170 = vrot.lane.b32.xlu0 %v136, 32
    %v171 = vpop.permute.xlu0 %170
    %v173 = vmul.f32 %v168, %v171
    %175 = vrot.lane.b32.xlu0 %v173, 96
    %v176 = vpop.permute.xlu0 %175
    %v178 = vsel %vm65, %v176, 0.0
    %179 = vadd.xlane.f32.xlu0 %v178
    %v180 = vpop.xlane.xlu0 %179
    %v181 = vadd.f32 %v180, %v144
    %v182 = vxor.u32 %v181, 2147483648
    %v183 = vmul.f32 %v182, 1.442695
    %v184 = vpow.pop %v183
    %v185 = vadd.f32 %v184, 1.0
    %v186 = vrcp.pop %v185
    %v187 = vmul.f32 1.0, %v186
    %vm188 = vcmask 23568
    %189 = vst.msk [vmem:[#allocation9] sm:$0xff] %vm188, %v187
    %v190 = vld [vmem:[%s2] sm:$0xff]
    %191 = vrot.lane.b32.xlu0 %v136, 64
    %v192 = vpop.permute.xlu0 %191
    %v194 = vmul.f32 %v190, %v192
    %196 = vrot.lane.b32.xlu0 %v194, 64
    %v197 = vpop.permute.xlu0 %196
    %v199 = vsel %vm65, %v197, 0.0
    %200 = vadd.xlane.f32.xlu0 %v199
    %v201 = vpop.xlane.xlu0 %200
    %v202 = vadd.f32 %v201, %v144
    %v203 = vxor.u32 %v202, 2147483648
    %v204 = vmul.f32 %v203, 1.442695
    %v205 = vpow.pop %v204
    %v206 = vadd.f32 %v205, 1.0
    %v207 = vrcp.pop %v206
    %v208 = vmul.f32 1.0, %v207
    %vm209 = vcmask 31768
    %210 = vst.msk [vmem:[#allocation9] sm:$0xff] %vm209, %v208
    %v211 = vld [vmem:[%s2] sm:$0xff]
    %212 = vrot.lane.b32.xlu0 %v136, 96
    %v213 = vpop.permute.xlu0 %212
    %v215 = vmul.f32 %v211, %v213
    %217 = vrot.lane.b32.xlu0 %v215, 32
    %v218 = vpop.permute.xlu0 %217
    %v220 = vsel %vm65, %v218, 0.0
    %221 = vadd.xlane.f32.xlu0 %v220
    %v222 = vpop.xlane.xlu0 %221
    %v223 = vadd.f32 %v222, %v144
    %v224 = vxor.u32 %v223, 2147483648
    %v225 = vmul.f32 %v224, 1.442695
    %v226 = vpow.pop %v225
    %v227 = vadd.f32 %v226, 1.0
    %v228 = vrcp.pop %v227
    %v229 = vmul.f32 1.0, %v228
    %vm230 = vcmask 39968
    %231 = vst.msk [vmem:[#allocation9] sm:$0xff] %vm230, %v229
    // Predicated region
    $region34: #{tpu_custom_call.1} parent=1 // pred_check
      _
    $region35: #{tpu_custom_call.1} parent=1 // pred_check_branch
      %233 = sbr.rel (0) target = $region37
    $region36: #{tpu_custom_call.1} parent=1 // pred_region
      %s235 = ssub.s32 128, 128
      %236 = vsyncadd [#allocation5], %s235
      %s238 = sshll.u32 [#allocation9], 4
      %s239 = int_to_ptr.vmem [resolvable:$true] %s238
      %241 = dma.vmem_to_hbm [thread:$0]  %s239, 128, %s5, [#allocation5]
    $region37: #{tpu_custom_call.1} parent=1 // pred_fallthru
      _
    // Predicated region
    $region38: #{tpu_custom_call.1} parent=1 // pred_check
      _
    $region39: #{tpu_custom_call.1} parent=1 // pred_check_branch
      %243 = sbr.rel (0) target = $region41
    $region40: #{tpu_custom_call.1} parent=1 // pred_region
      %244 = dma.done [#allocation5], 128
    $region41: #{tpu_custom_call.1} parent=1 // pred_fallthru
      _
    %245 = vsyncpa [#allocation4], 1
    %246 = vsyncpa [#allocation7], 1
    %247 = vsyncpa [#allocation5], 1

</llo_original>
